<compile_context>
chip_gen: v7x
topology: tpu7x:2x2x1
jax: 0.10.0
libtpu: 0.0.40
codegen_flags: <defaults>
</compile_context>

<pallas_src>
import functools

import jax
import jax.numpy as jnp
from jax.experimental import pallas as pl
from jax.experimental.pallas import tpu as pltpu


def _round_up(x, m):
    return ((x + m - 1) // m) * m


def _sublane_align(dtype):
    """Sublane packing factor: 8 for f32, 16 for bf16, 32 for int8/fp8."""
    return max(8, 32 // jnp.dtype(dtype).itemsize)


@functools.lru_cache(maxsize=1)
def _tpu_config():
    """Generation-aware tile targets / VMEM capacity."""
    kind = ""
    try:
        kind = jax.devices()[0].device_kind.lower()
    except Exception:
        pass
    two_cores = "v7" in kind  # v7x: 2 TensorCores share the 'parallel' grid axes.
    vmem_cap = None
    try:
        vmem_cap = int(pltpu.get_tpu_info().vmem_capacity_bytes)
    except Exception:
        vmem_cap = None
    if not vmem_cap:
        vmem_cap = (64 << 20) if two_cores else (128 << 20)
    if "v5" in kind and ("lite" in kind or "v5e" in kind):
        # v5e: ~197 TF/s bf16 vs ~0.82 TB/s -> 512 tiles are already compute-bound.
        targets = (512, 512, 512)
    else:
        # v6e / v7x: 512 tiles leave the K loop DMA-bound; 1024x1024x512 bf16
        # (~16-20 MiB live) fits even v7x's 64 MiB VMEM.
        targets = (1024, 1024, 512)
    return {"vmem_cap": vmem_cap, "targets": targets, "two_cores": two_cores}


def _choose_tile(dim, align, target, pow2=False):
    """Pick a tile (multiple of `align`, <= target) minimizing padded work.

    Small dims become a single full (aligned) block.  Otherwise, among aligned
    candidates (power-of-two multiples when pow2=True, to bucket tm), keep the
    ones whose round_up(dim, tile) is within ~6% of the best achievable padded
    size and return the largest (fewer grid steps / better DMA efficiency).
    """
    dim_aligned = _round_up(dim, align)
    if dim_aligned <= target:
        return dim_aligned
    if pow2:
        cands, c = [], align
        while c <= target:
            cands.append(c)
            c *= 2
    else:
        cands = list(range(align, target + 1, align))
    padded = [(_round_up(dim, c), c) for c in cands]
    best = min(p for p, _ in padded)
    limit = best + max(best // 16, align)
    return max(c for p, c in padded if p <= limit)


def _matmul_bias_kernel(x_ref, w_ref, b_ref, o_ref, acc_ref):
    """One (i, j, k) grid step of Y = X @ W_t + b (bias folded into acc init)."""
    k = pl.program_id(2)

    @pl.when(k == 0)
    def _():
        # Fold the f32 bias into the accumulator init; epilogue is a pure cast.
        acc_ref[...] = jnp.broadcast_to(b_ref[...], acc_ref.shape)

    acc_ref[...] += jnp.dot(
        x_ref[...], w_ref[...], preferred_element_type=jnp.float32
    )

    @pl.when(k == pl.num_programs(2) - 1)
    def _():
        o_ref[...] = acc_ref[...].astype(o_ref.dtype)


def _matmul_kernel(x_ref, w_ref, o_ref, acc_ref):
    """Bias-free variant (no bias DMA, no extra VALU work)."""
    k = pl.program_id(2)

    @pl.when(k == 0)
    def _():
        acc_ref[...] = jnp.zeros_like(acc_ref)

    acc_ref[...] += jnp.dot(
        x_ref[...], w_ref[...], preferred_element_type=jnp.float32
    )

    @pl.when(k == pl.num_programs(2) - 1)
    def _():
        o_ref[...] = acc_ref[...].astype(o_ref.dtype)


def _pallas_matmul(x2d, w_t, bias2d, *, tm, tn, tk, out_dtype):
    """x2d: [Mp, Kp], w_t: [Kp, Np] (pre-transposed/padded), bias2d: [1, Np]|None."""
    M, K = x2d.shape
    Kw, N = w_t.shape
    assert K == Kw and M % tm == 0 and N % tn == 0 and K % tk == 0
    grid = (M // tm, N // tn, K // tk)

    xb = jnp.dtype(x2d.dtype).itemsize
    wb = jnp.dtype(w_t.dtype).itemsize
    ob = jnp.dtype(out_dtype).itemsize

    # Double-buffered X / W / out tiles + f32 accumulator + bias, with headroom,
    # clamped to 90% of this generation's physical VMEM (no hard 48 MiB cap).
    vmem_cap = _tpu_config()["vmem_cap"]
    vmem_bytes = (2 * tm * tk * xb + 2 * tk * tn * wb + 2 * tm * tn * ob
                  + tm * tn * 4 + 2 * tn * 4)
    vmem_limit = min(max(int(vmem_bytes) + (4 << 20), 32 << 20),
                     int(vmem_cap * 0.9))

    cost = pl.CostEstimate(
        flops=2 * M * N * K,
        transcendentals=0,
        bytes_accessed=(M * K * xb * (N // tn)      # X re-read per N tile
                        + K * N * wb * (M // tm)    # W re-read per M tile
                        + M * N * ob),              # output write
    )

    in_specs = [
        pl.BlockSpec((tm, tk), lambda i, j, k: (i, k)),   # X tile
        pl.BlockSpec((tk, tn), lambda i, j, k: (k, j)),   # W.T tile
    ]
    args = [x2d, w_t]
    if bias2d is not None:
        in_specs.append(pl.BlockSpec((1, tn), lambda i, j, k: (0, j)))
        args.append(bias2d)

    return pl.pallas_call(
        _matmul_bias_kernel if bias2d is not None else _matmul_kernel,
        out_shape=jax.ShapeDtypeStruct((M, N), out_dtype),
        grid_spec=pltpu.PrefetchScalarGridSpec(
            num_scalar_prefetch=0,
            grid=grid,
            in_specs=in_specs,
            out_specs=pl.BlockSpec((tm, tn), lambda i, j, k: (i, j)),
            scratch_shapes=[pltpu.VMEM((tm, tn), jnp.float32)],
        ),
        compiler_params=pltpu.CompilerParams(
            dimension_semantics=("parallel", "parallel", "arbitrary"),
            vmem_limit_bytes=vmem_limit,
        ),
        cost_estimate=cost,
    )(*args)


@functools.partial(jax.jit,
                   static_argnames=("out_size", "compute_dtype", "tm", "tn", "tk"))
def _row_parallel_linear_forward(x, w_t_padded, bias2d, *, out_size,
                                 compute_dtype, tm, tn, tk):
    """x: [S, B, H]; w_t_padded: [Kp, Np] compute_dtype; bias2d: [1, Np] f32|None."""
    S, B, H = x.shape
    M, K, N = S * B, H, out_size
    Kp, Np = w_t_padded.shape

    x2d = x.reshape(M, K)
    if x2d.dtype != jnp.dtype(compute_dtype):
        x2d = x2d.astype(compute_dtype)   # bf16 MXU operands, f32 accumulation.

    Mp = _round_up(M, tm)
    if (Mp, Kp) != (M, K):
        # Zero K-padding keeps the reduction exact; padded M rows are sliced off.
        # TODO(synk): handle the ragged M tail with an in-kernel masked store to
        #             avoid this extra HBM pass when M is not tile-aligned.
        x2d = jnp.pad(x2d, ((0, Mp - M), (0, Kp - K)))

    out2d = _pallas_matmul(x2d, w_t_padded, bias2d,
                           tm=tm, tn=tn, tk=tk, out_dtype=x.dtype)
    if (Mp, Np) != (M, N):
        out2d = out2d[:M, :N]
    return out2d.reshape(S, B, N)


class RowParallelLinearPallas:
    """JAX/Pallas re-implementation of Megatron RowParallelLinear.forward with
    tensor_model_parallel_world_size == 1 and skip_bias_add=False."""

    def __init__(self, input_size, output_size, *, bias=True,
                 params_dtype=jnp.float32, compute_dtype=jnp.bfloat16,
                 tile_target=None, key=None):
        self.input_size = input_size
        self.output_size = output_size
        # world_size == 1  =>  input_size_per_partition == input_size
        self.input_size_per_partition = input_size
        self.compute_dtype = compute_dtype

        if key is None:
            key = jax.random.PRNGKey(0)
        # xavier_normal_ equivalent: std = sqrt(2 / (fan_in + fan_out))
        std = (2.0 / (input_size + output_size)) ** 0.5
        self.weight = (
            std * jax.random.normal(
                key, (output_size, self.input_size_per_partition), jnp.float32)
        ).astype(params_dtype)
        self.bias = jnp.zeros((output_size,), params_dtype) if bias else None

        cfg = _tpu_config()
        self._two_cores = cfg["two_cores"]
        if tile_target is None:
            tgt_m, tgt_n, tgt_k = cfg["targets"]
        else:
            tgt_m = tgt_n = tgt_k = tile_target
        self._tgt_m = tgt_m

        # K/N tiles depend only on the (fixed) weight dims -> pick once at init,
        # minimizing padding bloat over aligned candidates.
        self._tk = _choose_tile(input_size, 128, tgt_k)
        self._tn = _choose_tile(output_size, 128, tgt_n)
        Kp = _round_up(input_size, self._tk)
        Np = _round_up(output_size, self._tn)

        # Transpose + pad + cast the weight ONCE ([O, H] -> [Kp, Np] bf16); every
        # forward reuses this buffer (no per-call HBM transpose / cast pass).
        w_t = jnp.swapaxes(self.weight, 0, 1).astype(compute_dtype)
        if (Kp, Np) != (input_size, output_size):
            w_t = jnp.pad(w_t, ((0, Kp - input_size), (0, Np - output_size)))
        self._w_t_padded = w_t

        if bias:
            b = self.bias.astype(jnp.float32)
            if Np != output_size:
                b = jnp.pad(b, ((0, Np - output_size),))
            self._bias2d = b.reshape(1, Np)
        else:
            self._bias2d = None

    def __call__(self, input_):
        # input_: [sequence, batch, hidden]
        S, B, H = input_.shape
        assert H == self.input_size_per_partition
        M = S * B

        sub = _sublane_align(self.compute_dtype)     # dtype-aware sublane align
        tm = _choose_tile(M, sub, self._tgt_m, pow2=True)
        tn = self._tn

        # v7x safeguard: keep both TensorCores busy when the 'parallel' grid
        # would otherwise collapse to a single step (e.g. decode-shaped GEMMs).
        if self._two_cores:
            Mp = _round_up(M, tm)
            Np = self._w_t_padded.shape[1]
            if (Mp // tm) * (Np // tn) < 2:
                if tn % 256 == 0:
                    tn //= 2
                elif tm % (2 * sub) == 0:
                    tm //= 2

        output = _row_parallel_linear_forward(
            input_, self._w_t_padded, self._bias2d,
            out_size=self.output_size, compute_dtype=self.compute_dtype,
            tm=tm, tn=tn, tk=self._tk,
        )
        output_bias = None  # skip_bias_add=False path
        return output, output_bias


def _reference(x, weight, bias, compute_dtype):
    """F.linear reference with the same operand rounding as the kernel."""
    xc = x.astype(compute_dtype).astype(jnp.float32)
    wc = weight.astype(compute_dtype).astype(jnp.float32)
    y = jnp.einsum("sbh,oh->sbo", xc, wc)
    if bias is not None:
        y = y + bias.astype(jnp.float32)
    return y.astype(x.dtype)


if __name__ == "__main__":
    key = jax.random.PRNGKey(0)
    kx, kw, kx2 = jax.random.split(key, 3)

    # --- Test 1: small shapes, default bf16 compute, bias path ------------------
    seq, batch, hidden, out_features = 8, 2, 32, 32
    x = jax.random.normal(kx, (seq, batch, hidden), jnp.float32)
    layer = RowParallelLinearPallas(hidden, out_features, bias=True, key=kw)
    out, out_bias = layer(x)
    out = jax.block_until_ready(out)
    ref = _reference(x, layer.weight, layer.bias, layer.compute_dtype)
    assert out.shape == (seq, batch, out_features)
    assert out_bias is None
    assert jnp.allclose(out, ref, atol=1e-2, rtol=1e-2)

    # --- Test 2: exact f32 compute path (original module numerics) --------------
    layer_f32 = RowParallelLinearPallas(hidden, out_features, bias=True,
                                        compute_dtype=jnp.float32, key=kw)
    out_f32, _ = layer_f32(x)
    out_f32 = jax.block_until_ready(out_f32)
    ref_f32 = jnp.einsum("sbh,oh->sbo", x, layer_f32.weight) + layer_f32.bias
    assert jnp.allclose(out_f32, ref_f32, atol=1e-5, rtol=1e-5)

    # --- Test 3: ragged M/N/K + multi-step K accumulation (forced 128 tiles) ----
    seq2, batch2, hidden2, out2 = 9, 3, 320, 200
    x2 = jax.random.normal(kx2, (seq2, batch2, hidden2), jnp.float32)
    layer_rag = RowParallelLinearPallas(hidden2, out2, bias=True,
                                        tile_target=128, key=kw)
    out_rag, _ = layer_rag(x2)
    out_rag = jax.block_until_ready(out_rag)
    ref_rag = _reference(x2, layer_rag.weight, layer_rag.bias,
                         layer_rag.compute_dtype)
    assert out_rag.shape == (seq2, batch2, out2)
    assert jnp.allclose(out_rag, ref_rag, atol=2e-2, rtol=2e-2)

    # --- Test 4: bias=None path (skips the bias DMA / add entirely) -------------
    layer_nb = RowParallelLinearPallas(hidden, out_features, bias=False, key=kw)
    out_nb, _ = layer_nb(x)
    out_nb = jax.block_until_ready(out_nb)
    ref_nb = _reference(x, layer_nb.weight, None, layer_nb.compute_dtype)
    assert jnp.allclose(out_nb, ref_nb, atol=1e-2, rtol=1e-2)

    print("KERNEL_OK")
</pallas_src>

<mosaic_0001>
module attributes {stable_mosaic.version = 11 : i64} {
  func.func @_matmul_bias_kernel(%arg0: i32, %arg1: i32, %arg2: i32, %arg3: memref<16x128xbf16, #tpu.memory_space<vmem>>, %arg4: memref<128x128xbf16, #tpu.memory_space<vmem>>, %arg5: memref<1x128xf32, #tpu.memory_space<vmem>>, %arg6: memref<16x128xf32, #tpu.memory_space<vmem>>, %arg7: memref<16x128xf32, #tpu.memory_space<vmem>>) attributes {dimension_semantics = [#tpu.dimension_semantics<parallel>, #tpu.dimension_semantics<parallel>, #tpu.dimension_semantics<arbitrary>], iteration_bounds = array<i64: 1, 1, 1>, scalar_prefetch = 0 : i64, scratch_operands = 1 : i64, tpu.core_type = #tpu.core_type<tc>, window_params = [{transform_indices = @transform_0, window_bounds = array<i64: 16, 128>}, {transform_indices = @transform_1, window_bounds = array<i64: 128, 128>}, {transform_indices = @transform_2, window_bounds = array<i64: 1, 128>}, {transform_indices = @transform_3, window_bounds = array<i64: 16, 128>}]} {
    %c0_i32 = arith.constant 0 : i32
    %0 = arith.cmpi eq, %arg2, %c0_i32 : i32
    %1 = arith.extui %0 : i1 to i32
    %c0_i32_0 = arith.constant 0 : i32
    %2 = arith.cmpi ne, %1, %c0_i32_0 : i32
    scf.if %2 {
      %c0_10 = arith.constant 0 : index
      %c0_11 = arith.constant 0 : index
      %12 = vector.load %arg5[%c0_10, %c0_11] : memref<1x128xf32, #tpu.memory_space<vmem>>, vector<1x128xf32>
      %13 = vector.shape_cast %12 : vector<1x128xf32> to vector<1x128xf32>
      %14 = vector.broadcast %13 : vector<1x128xf32> to vector<16x128xf32>
      %c0_12 = arith.constant 0 : index
      %c0_13 = arith.constant 0 : index
      %15 = vector.load %arg7[%c0_12, %c0_13] : memref<16x128xf32, #tpu.memory_space<vmem>>, vector<16x128xf32>
      tpu.vector_store %arg7[%c0_12, %c0_13], %14 {strides = array<i32>} : memref<16x128xf32, #tpu.memory_space<vmem>>, vector<16x128xf32>,
    } else {
    }
    %c0 = arith.constant 0 : index
    %c0_1 = arith.constant 0 : index
    %3 = vector.load %arg7[%c0, %c0_1] : memref<16x128xf32, #tpu.memory_space<vmem>>, vector<16x128xf32>
    %c0_2 = arith.constant 0 : index
    %c0_3 = arith.constant 0 : index
    %4 = vector.load %arg3[%c0_2, %c0_3] : memref<16x128xbf16, #tpu.memory_space<vmem>>, vector<16x128xbf16>
    %c0_4 = arith.constant 0 : index
    %c0_5 = arith.constant 0 : index
    %5 = vector.load %arg4[%c0_4, %c0_5] : memref<128x128xbf16, #tpu.memory_space<vmem>>, vector<128x128xbf16>
    %cst = arith.constant dense<0.000000e+00> : vector<16x128xf32>
    %6 = tpu.matmul %4, %5, %cst {dimension_numbers = #tpu.dot_dimension_numbers<[1], [0], [0], [1], [0, 0, 1, 1], [], []>} : vector<16x128xbf16>, vector<128x128xbf16>, vector<16x128xf32> -> vector<16x128xf32>
    %7 = arith.addf %3, %6 : vector<16x128xf32>
    %c0_6 = arith.constant 0 : index
    %c0_7 = arith.constant 0 : index
    %8 = vector.load %arg7[%c0_6, %c0_7] : memref<16x128xf32, #tpu.memory_space<vmem>>, vector<16x128xf32>
    tpu.vector_store %arg7[%c0_6, %c0_7], %7 {strides = array<i32>} : memref<16x128xf32, #tpu.memory_space<vmem>>, vector<16x128xf32>,
    %c0_i32_8 = arith.constant 0 : i32
    %9 = arith.cmpi eq, %arg2, %c0_i32_8 : i32
    %10 = arith.extui %9 : i1 to i32
    %c0_i32_9 = arith.constant 0 : i32
    %11 = arith.cmpi ne, %10, %c0_i32_9 : i32
    scf.if %11 {
      %c0_10 = arith.constant 0 : index
      %c0_11 = arith.constant 0 : index
      %12 = vector.load %arg7[%c0_10, %c0_11] : memref<16x128xf32, #tpu.memory_space<vmem>>, vector<16x128xf32>
      %c0_12 = arith.constant 0 : index
      %c0_13 = arith.constant 0 : index
      %13 = vector.load %arg6[%c0_12, %c0_13] : memref<16x128xf32, #tpu.memory_space<vmem>>, vector<16x128xf32>
      tpu.vector_store %arg6[%c0_12, %c0_13], %12 {strides = array<i32>} : memref<16x128xf32, #tpu.memory_space<vmem>>, vector<16x128xf32>,
    } else {
    }
    return
  }
  func.func @transform_0(%arg0: i32, %arg1: i32, %arg2: i32) -> (i32, i32) {
    %c0_i32 = arith.constant 0 : i32
    return %arg0, %arg2 : i32, i32
  }
  func.func @transform_1(%arg0: i32, %arg1: i32, %arg2: i32) -> (i32, i32) {
    %c0_i32 = arith.constant 0 : i32
    return %arg2, %arg1 : i32, i32
  }
  func.func @transform_2(%arg0: i32, %arg1: i32, %arg2: i32) -> (i32, i32) {
    %c0_i32 = arith.constant 0 : i32
    %c0_i32_0 = arith.constant 0 : i32
    return %c0_i32, %arg1 : i32, i32
  }
  func.func @transform_3(%arg0: i32, %arg1: i32, %arg2: i32) -> (i32, i32) {
    %c0_i32 = arith.constant 0 : i32
    return %arg0, %arg1 : i32, i32
  }
}

</mosaic_0001>

<llo_original>
// kernel: _row_parallel_linear_forward.1
$region0: #{_row_parallel_linear_forward.1}
  #allocation0 [shape = 'u32[]', space=smem, size = 0x4, offset = 0x4, fixed_abs, tag = 'smem constant byte address 0x4 - core index']
  #allocation1 [shape = 'u32[144,128]{1,0:T(1,128)}', space=vmem, size = 0x12000, scoped, tag = 'internal scratch']
  #allocation2 [shape = 'f32[16,128]{1,0:T(8,128)}', space=vmem, size = 0x2000, scoped, tag = 'scratch operand']
  %s0 = inlined_call_operand.vmem [shape: bf16[16,128], index: 0, kind: input, shape index: {}]
  %s1 = inlined_call_operand.hbm [shape: bf16[128,128], index: 1, kind: input, shape index: {}]
  %s2 = inlined_call_operand.vmem [shape: f32[1,128], index: 2, kind: input, shape index: {}]
  %s3 = inlined_call_operand.hbm [shape: f32[16,128], index: 3, kind: output, shape index: {}]
  %s4 = sld [smem:[#allocation0]]
  $region34: #{_row_parallel_linear_forward.1} parent=0
    _
  %s6 = ssub.s32 1, %s4
  %s7 = scalar_select 0, %s6, %s4
  $region1: #{_row_parallel_linear_forward.1} parent=0
    #allocation3 [shape = 'u8[32768]{0}', space=vmem, size = 0x8000, scoped, tag = 'input window, operand 1, single buffered']
    #allocation4 [shape = 's32[1]{0}', space=sflag, size = 0x4, scoped, tag = 'scoped memory for _row_parallel_linear_forward.1']
    #allocation5 [shape = 's32[1]{0}', space=sflag, size = 0x4, scoped, tag = 'scoped memory for _row_parallel_linear_forward.1']
    #allocation6 [shape = 'u8[8192]{0}', space=vmem, size = 0x2000, scoped, tag = 'output window, operand 0, single buffered']
    %8 = vsyncpa [#allocation4], 0
    %9 = vsyncpa [#allocation5], 0
    // Predicated region
    $region2: #{_row_parallel_linear_forward.1} parent=1 // pred_check
      _
    $region3: #{_row_parallel_linear_forward.1} parent=1 // pred_check_branch
      %11 = sbr.rel (0) target = $region5
    $region4: #{_row_parallel_linear_forward.1} parent=1 // pred_region
      _
    $region5: #{_row_parallel_linear_forward.1} parent=1 // pred_fallthru
      _
    // Predicated region
    $region6: #{_row_parallel_linear_forward.1} parent=1 // pred_check
      _
    $region7: #{_row_parallel_linear_forward.1} parent=1 // pred_check_branch
      %13 = sbr.rel (0) target = $region9
    $region8: #{_row_parallel_linear_forward.1} parent=1 // pred_region
      %s15 = ssub.s32 1024, 1024
      %16 = vsyncadd [#allocation4], %s15
      %s17 = sshll.u32 [#allocation3], 4
      %s18 = int_to_ptr.vmem [resolvable:$true] %s17
      %23 = dma.hbm_to_vmem [thread:$0]  %s1, 1024, %s18, [#allocation4], 64, 64, 4
    $region9: #{_row_parallel_linear_forward.1} parent=1 // pred_fallthru
      _
    // Predicated region
    $region10: #{_row_parallel_linear_forward.1} parent=1 // pred_check
      _
    $region11: #{_row_parallel_linear_forward.1} parent=1 // pred_check_branch
      %25 = sbr.rel (0) target = $region13
    $region12: #{_row_parallel_linear_forward.1} parent=1 // pred_region
      _
    $region13: #{_row_parallel_linear_forward.1} parent=1 // pred_fallthru
      _
    // Predicated region
    $region14: #{_row_parallel_linear_forward.1} parent=1 // pred_check
      _
    $region15: #{_row_parallel_linear_forward.1} parent=1 // pred_check_branch
      %27 = sbr.rel (0) target = $region17
    $region16: #{_row_parallel_linear_forward.1} parent=1 // pred_region
      %28 = dma.done [#allocation4], 1024
    $region17: #{_row_parallel_linear_forward.1} parent=1 // pred_fallthru
      _
    %p30 = scmp.eq.s32.totalorder 0, 0
    // Predicated region
    $region18: #{_row_parallel_linear_forward.1} parent=1 // pred_check
      %p31 = pneg %p30
    $region19: #{_row_parallel_linear_forward.1} parent=1 // pred_check_branch
      %33 = sbr.rel (%p31) target = $region21
    $region20: #{_row_parallel_linear_forward.1} parent=1 // pred_region
      %v34 = vld [vmem:[%s2] sm:$0x1]
      %v36 = vlaneseq
      %v37 = vshrl.u32 %v36, 7
      %v38 = vsub.s32 0, %v37
      %v39 = vrot.slane %v34, %v38
      %41 = vst [vmem:[#allocation2] sm:$0xff] %v39
      %42 = vst [vmem:[#allocation2 + $0x8] sm:$0xff] %v39
    $region21: #{_row_parallel_linear_forward.1} parent=1 // pred_fallthru
      _
    %v43 = vld [vmem:[#allocation2] sm:$0xff]
    %v44 = vld [vmem:[#allocation2 + $0x8] sm:$0xff]
    %v45 = vld [vmem:[%s0] sm:$0xf]
    %v46 = vld [vmem:[%s0 + $0x4] sm:$0xf]
    %v47 = vld [vmem:[#allocation3] sm:$0xf]
    %v48 = vld [vmem:[#allocation3 + $0x4] sm:$0xf]
    %v49 = vld [vmem:[#allocation3 + $0x8] sm:$0xf]
    %v50 = vld [vmem:[#allocation3 + $0xc] sm:$0xf]
    %v51 = vld [vmem:[#allocation3 + $0x10] sm:$0xf]
    %v52 = vld [vmem:[#allocation3 + $0x14] sm:$0xf]
    %v53 = vld [vmem:[#allocation3 + $0x18] sm:$0xf]
    %v54 = vld [vmem:[#allocation3 + $0x1c] sm:$0xf]
    %v55 = vld [vmem:[#allocation3 + $0x20] sm:$0xf]
    %v56 = vld [vmem:[#allocation3 + $0x24] sm:$0xf]
    %v57 = vld [vmem:[#allocation3 + $0x28] sm:$0xf]
    %v58 = vld [vmem:[#allocation3 + $0x2c] sm:$0xf]
    %v59 = vld [vmem:[#allocation3 + $0x30] sm:$0xf]
    %v60 = vld [vmem:[#allocation3 + $0x34] sm:$0xf]
    %v61 = vld [vmem:[#allocation3 + $0x38] sm:$0xf]
    %v62 = vld [vmem:[#allocation3 + $0x3c] sm:$0xf]
    %v65 = vunpack.c.l.b16 %v45
    %v66 = vunpack.c.l.b16 %v46
    %v67 = vpack.c.b16 %v66, %v65
    %v85 = vunpack.c.l.b16 %v47
    %v86 = vunpack.c.l.b16 %v48
    %v87 = vunpack.c.l.b16 %v49
    %v88 = vunpack.c.l.b16 %v50
    %v89 = vunpack.c.l.b16 %v51
    %v90 = vunpack.c.l.b16 %v52
    %v91 = vunpack.c.l.b16 %v53
    %v92 = vunpack.c.l.b16 %v54
    %v93 = vunpack.c.l.b16 %v55
    %v94 = vunpack.c.l.b16 %v56
    %v95 = vunpack.c.l.b16 %v57
    %v96 = vunpack.c.l.b16 %v58
    %v97 = vunpack.c.l.b16 %v59
    %v98 = vunpack.c.l.b16 %v60
    %v99 = vunpack.c.l.b16 %v61
    %v100 = vunpack.c.l.b16 %v62
    %v101 = vpack.c.b16 %v86, %v85
    %v102 = vpack.c.b16 %v88, %v87
    %v103 = vpack.c.b16 %v90, %v89
    %v104 = vpack.c.b16 %v92, %v91
    %v105 = vpack.c.b16 %v94, %v93
    %v106 = vpack.c.b16 %v96, %v95
    %v107 = vpack.c.b16 %v98, %v97
    %v108 = vpack.c.b16 %v100, %v99
    %117 = vmatprep.subr.bf16.mxu0 0
    %118 = vmatpush1.bf16.msra.mxu0 %v101
    %119 = vmatprep.subr.bf16.mxu0 0
    %120 = vmatpush1.bf16.msra.mxu0 %v102
    %121 = vmatprep.subr.bf16.mxu0 0
    %122 = vmatpush1.bf16.msra.mxu0 %v103
    %123 = vmatprep.subr.bf16.mxu0 0
    %124 = vmatpush1.bf16.msra.mxu0 %v104
    %125 = vmatprep.subr.bf16.mxu0 0
    %126 = vmatpush1.bf16.msra.mxu0 %v105
    %127 = vmatprep.subr.bf16.mxu0 0
    %128 = vmatpush1.bf16.msra.mxu0 %v106
    %129 = vmatprep.subr.bf16.mxu0 0
    %130 = vmatpush1.bf16.msra.mxu0 %v107
    %131 = vmatprep.subr.bf16.mxu0 0
    %132 = vmatpush1.bf16.msra.mxu0 %v108
    %133 = vmatprep.subr.bf16.mxu0 0
    %134 = vmatpush1.bf16.msra.mxu0 0
    %135 = vmatprep.subr.bf16.mxu0 0
    %136 = vmatpush1.bf16.msra.mxu0 0
    %137 = vmatprep.subr.bf16.mxu0 0
    %138 = vmatpush1.bf16.msra.mxu0 0
    %139 = vmatprep.subr.bf16.mxu0 0
    %140 = vmatpush1.bf16.msra.mxu0 0
    %141 = vmatprep.subr.bf16.mxu0 0
    %142 = vmatpush1.bf16.msra.mxu0 0
    %143 = vmatprep.subr.bf16.mxu0 0
    %144 = vmatpush1.bf16.msra.mxu0 0
    %145 = vmatprep.subr.bf16.mxu0 0
    %146 = vmatpush1.bf16.msra.mxu0 0
    %147 = vmatprep.subr.bf16.mxu0 0
    %148 = vmatpush1.bf16.msra.mxu0 0
    %149 = vmatprep.mubr.bf16.mxu0 0
    %150 = vmatmul.mubr.bf16.gmra.mrb[0].mxu0 %v67
    %v151 = vpop.f32.mrb[0].mxu0
    %v152 = vadd.f32 0.0, %v151
    %v153 = vpop.f32.mrb[0].mxu0
    %v154 = vpop.f32.mrb[0].mxu0
    %v155 = vadd.f32 0.0, %v154
    %v156 = vpop.f32.mrb[0].mxu0
    %157 = vdwg.mxu0
    %v158 = vadd.f32 %v43, %v152
    %v159 = vadd.f32 %v44, %v155
    %160 = vst [vmem:[#allocation2] sm:$0xff] %v158
    %161 = vst [vmem:[#allocation2 + $0x8] sm:$0xff] %v159
    // Predicated region
    $region22: #{_row_parallel_linear_forward.1} parent=1 // pred_check
      %p162 = pneg %p30
    $region23: #{_row_parallel_linear_forward.1} parent=1 // pred_check_branch
      %164 = sbr.rel (%p162) target = $region25
    $region24: #{_row_parallel_linear_forward.1} parent=1 // pred_region
      %v165 = vld [vmem:[#allocation2] sm:$0xff]
      %v166 = vld [vmem:[#allocation2 + $0x8] sm:$0xff]
      %167 = vst [vmem:[#allocation6] sm:$0xff] %v165
      %168 = vst [vmem:[#allocation6 + $0x8] sm:$0xff] %v166
    $region25: #{_row_parallel_linear_forward.1} parent=1 // pred_fallthru
      _
    // Predicated region
    $region26: #{_row_parallel_linear_forward.1} parent=1 // pred_check
      _
    $region27: #{_row_parallel_linear_forward.1} parent=1 // pred_check_branch
      %170 = sbr.rel (0) target = $region29
    $region28: #{_row_parallel_linear_forward.1} parent=1 // pred_region
      %s172 = ssub.s32 256, 256
      %173 = vsyncadd [#allocation5], %s172
      %s174 = sshll.u32 [#allocation6], 4
      %s175 = int_to_ptr.vmem [resolvable:$true] %s174
      %180 = dma.vmem_to_hbm [thread:$0]  %s175, 256, %s3, [#allocation5], 128, 128, 8
    $region29: #{_row_parallel_linear_forward.1} parent=1 // pred_fallthru
      _
    // Predicated region
    $region30: #{_row_parallel_linear_forward.1} parent=1 // pred_check
      _
    $region31: #{_row_parallel_linear_forward.1} parent=1 // pred_check_branch
      %182 = sbr.rel (0) target = $region33
    $region32: #{_row_parallel_linear_forward.1} parent=1 // pred_region
      %183 = dma.done [#allocation5], 256
    $region33: #{_row_parallel_linear_forward.1} parent=1 // pred_fallthru
      _
    %184 = vsyncpa [#allocation4], 1
    %185 = vsyncpa [#allocation5], 1

</llo_original>
